<compile_context>
chip_gen: v5e
topology: v5e:2x2
jax: 0.10.0
libtpu: 0.0.40
codegen_flags: <defaults>
</compile_context>

<pallas_src>
import jax
import jax.numpy as jnp
from jax.experimental import pallas as pl
from jax.experimental.pallas import tpu as pltpu


# 64 MiB per chunk on multi-TC chips: at v7x's ~3.2 TB/s that is ~20 us of
# copy against ~0.35 us of per-grid-step overhead (<2% tax).  Nothing is
# staged in VMEM, so chunk size is NOT bounded by the 64 MiB v7x VMEM.
_CHUNK_BYTES = 64 * 1024 * 1024
# Below this, even on v7x a single whole-array DMA is within noise of the
# chunked 2-TC split, so skip the grid entirely.
_SMALL_BYTES = 16 * 1024 * 1024


def _tensorcores_per_chip():
    """Best-effort TC-per-chip count (v7x / v4 / v5p expose 2, else 1)."""
    try:
        kind = jax.devices()[0].device_kind.lower()
    except Exception:
        return 1
    return 2 if any(m in kind for m in ("v7", "v4", "v5p")) else 1


def _whole_array_copy_kernel(x_hbm, o_hbm, sem):
    # Single DMA over the full array: HBM -> HBM, no VMEM staging.
    cp = pltpu.make_async_copy(x_hbm, o_hbm, sem)
    cp.start()
    cp.wait()


def _whole_array_copy(x, cost):
    return pl.pallas_call(
        _whole_array_copy_kernel,
        out_shape=jax.ShapeDtypeStruct(x.shape, x.dtype),
        in_specs=[pl.BlockSpec(memory_space=pl.ANY)],
        out_specs=pl.BlockSpec(memory_space=pl.ANY),
        scratch_shapes=[pltpu.SemaphoreType.DMA],
        cost_estimate=cost,
        compiler_params=pltpu.CompilerParams(has_side_effects=True),
    )(x)


def _make_chunked_copy_kernel(chunk_rows, num_chunks, tail_rows):
    """Per-grid-step copy of `chunk_rows` leading-axis rows.

    Each step starts two half-chunk DMAs (separate semaphores) before waiting,
    so >=2 DMAs stay in flight within the step.  The last step additionally
    starts the static ragged tail on a third semaphore before any wait, so the
    tail copy is overlapped with the main chunk instead of serialized.
    All DMAs of a step are waited within that step (no cross-step in-flight
    state), which keeps dimension_semantics=("parallel",) correct.
    """
    half_a = chunk_rows // 2
    half_b = chunk_rows - half_a
    split = half_a > 0 and half_b > 0  # chunk_rows >= 2 -> two in-flight halves

    def kernel(x_hbm, o_hbm, sems):
        i = pl.program_id(0)
        start = pl.multiple_of(i * chunk_rows, chunk_rows)

        if split:
            cp_a = pltpu.make_async_copy(
                x_hbm.at[pl.ds(start, half_a)],
                o_hbm.at[pl.ds(start, half_a)],
                sems.at[0],
            )
            cp_b = pltpu.make_async_copy(
                x_hbm.at[pl.ds(start + half_a, half_b)],
                o_hbm.at[pl.ds(start + half_a, half_b)],
                sems.at[1],
            )
            cp_a.start()
            cp_b.start()
        else:
            # Degenerate 1-row chunk: single DMA per step.
            cp_a = pltpu.make_async_copy(
                x_hbm.at[pl.ds(start, chunk_rows)],
                o_hbm.at[pl.ds(start, chunk_rows)],
                sems.at[0],
            )
            cp_a.start()
            cp_b = None

        if tail_rows > 0:  # trace-time constant remainder of rows
            @pl.when(i == pl.num_programs(0) - 1)
            def _():
                t0 = num_chunks * chunk_rows
                tcp = pltpu.make_async_copy(
                    x_hbm.at[pl.ds(t0, tail_rows)],
                    o_hbm.at[pl.ds(t0, tail_rows)],
                    sems.at[2],
                )
                tcp.start()  # overlapped with cp_a / cp_b (started above)
                tcp.wait()

        cp_a.wait()
        if cp_b is not None:
            cp_b.wait()

    return kernel


def identity_pallas(x, *, alias_input=False):
    """Identity forward: returns x's values unchanged (same shape, dtype).

    alias_input=True is the truly-free identity (no HBM traffic at all);
    default False keeps a distinct output buffer so callers may still use x.
    """
    if alias_input or x.size == 0:
        return x

    nbytes = x.size * x.dtype.itemsize
    # Pure memory traffic: read + write of the whole array, zero flops.
    cost = pl.CostEstimate(flops=0, transcendentals=0, bytes_accessed=2 * nbytes)

    multi_tc = _tensorcores_per_chip() >= 2

    # Single-TC chips (v5e/v6e): a "parallel" grid buys nothing -- one
    # whole-array DMA keeps the DMA engine continuously busy and is the floor.
    # Also take this path for small tensors / shapes we cannot row-chunk.
    if (not multi_tc) or nbytes <= _SMALL_BYTES or x.ndim == 0 or x.shape[0] < 2:
        return _whole_array_copy(x, cost)

    # Multi-TC (v7x) large path: chunk along the leading axis of the original
    # N-D shape (no reshape(-1) -> no hidden layout-copy pass).
    rows = x.shape[0]
    row_bytes = (x.size // rows) * x.dtype.itemsize
    chunk_rows = min(rows, max(1, _CHUNK_BYTES // row_bytes))
    num_chunks = rows // chunk_rows
    tail_rows = rows - num_chunks * chunk_rows

    # Guard: keep >=2 chunks per TensorCore if possible; if enlarging chunks
    # left <4 chunks, emit exactly 2 chunks of ~half the rows each so both
    # v7x TensorCores still drive DMA descriptors.
    if num_chunks < 4:
        chunk_rows = rows // 2
        num_chunks = 2
        tail_rows = rows - num_chunks * chunk_rows

    kernel = _make_chunked_copy_kernel(chunk_rows, num_chunks, tail_rows)
    return pl.pallas_call(
        kernel,
        out_shape=jax.ShapeDtypeStruct(x.shape, x.dtype),
        grid=(num_chunks,),
        in_specs=[pl.BlockSpec(memory_space=pl.ANY)],
        out_specs=pl.BlockSpec(memory_space=pl.ANY),
        scratch_shapes=[pltpu.SemaphoreType.DMA((3,))],
        cost_estimate=cost,
        compiler_params=pltpu.CompilerParams(
            dimension_semantics=("parallel",),
            has_side_effects=True,
        ),
    )(x)


if __name__ == "__main__":
    key = jax.random.PRNGKey(0)
    # Small NCHW video-frame-like input: batch=2, channels=4, H=W=16.
    x = jax.random.normal(key, (2, 4, 16, 16), dtype=jnp.float32)

    y = identity_pallas(x)
    y = jax.block_until_ready(y)

    assert y.shape == x.shape, (y.shape, x.shape)
    assert y.dtype == x.dtype, (y.dtype, x.dtype)
    assert bool(jnp.all(y == x)), "identity mismatch"

    print("KERNEL_OK")
</pallas_src>

<mosaic_0001>
module attributes {stable_mosaic.version = 11 : i64} {
  func.func @_whole_array_copy_kernel(%arg0: memref<2x4x16x16xf32, #tpu.memory_space<any>>, %arg1: memref<2x4x16x16xf32, #tpu.memory_space<any>>, %arg2: memref<!tpu.dma_semaphore, #tpu.memory_space<semaphore_mem>>) attributes {dimension_semantics = [], scalar_prefetch = 0 : i64, scratch_operands = 1 : i64, tpu.core_type = #tpu.core_type<tc>} {
    tpu.enqueue_dma source(%arg0 : memref<2x4x16x16xf32, #tpu.memory_space<any>>) target(%arg1 : memref<2x4x16x16xf32, #tpu.memory_space<any>>) target_semaphore(%arg2 : memref<!tpu.dma_semaphore, #tpu.memory_space<semaphore_mem>>)
    tpu.wait_dma2 semaphore(%arg2 : memref<!tpu.dma_semaphore, #tpu.memory_space<semaphore_mem>>) src(%arg0 : memref<2x4x16x16xf32, #tpu.memory_space<any>>) dst(%arg1 : memref<2x4x16x16xf32, #tpu.memory_space<any>>)
    return
  }
}

</mosaic_0001>

<llo_original>
// kernel: tpu_custom_call.1
$region0: #{tpu_custom_call.1}
  #allocation0 [shape = 'u32[]', space=smem, size = 0x4, offset = 0x4, fixed_abs, tag = 'smem constant byte address 0x4 - core index']
  #allocation1 [shape = 'u32[72,128]{1,0:T(1,128)}', space=vmem, size = 0x9000, scoped, tag = 'internal scratch']
  #allocation2 [shape = 's32[1]{0}', space=sflag, size = 0x4, scoped, tag = 'scratch operand']
  #allocation3 [shape = 's32[]', space=sflag, size = 0x4, offset = 0, fixed_abs, tag = 'sflag constant byte address 0x0 - dummy sync flag']
  #allocation4 [shape = 'u32[0]{0}', space=smem, size = 0, offset = 0, fixed_abs, tag = 'smem constant byte address 0x0 - null']
  %s0 = inlined_call_operand.hbm [shape: f32[2,4,16,16], index: 0, kind: input, shape index: {}]
  %s1 = inlined_call_operand.hbm [shape: f32[2,4,16,16], index: 1, kind: output, shape index: {}]
  %s2 = sld [smem:[#allocation0]]
  $region2: #{tpu_custom_call.1} parent=0
    _
  %s4 = ssub.s32 1, %s2
  %s5 = scalar_select 0, %s4, %s2
  %s7 = sshll.u32 1, 14
  %s8 = sxor.u32 4294967295, %s7
  %s10 = sshll.u32 %s0, 4
  %s11 = int_to_ptr.hbm [resolvable:$true] %s10
  %s12 = sshll.u32 %s1, 4
  %s13 = int_to_ptr.hbm [resolvable:$true] %s12
  %16 = dma.general %s11, 2048, %s13, [#allocation2], [#allocation3], [#allocation4], 0, 0
  %s17 = smul.u32 2, 4
  %s18 = smul.u32 %s17, 16
  %s19 = smul.u32 %s18, 1
  %s20 = sshll.u32 %s19, 4
  %21 = dma.done [#allocation2], %s20
  %22 = vsyncmov [#allocation2]
  %s23 = vpop.sfrf %22
  %p24 = scmp.eq.s32.totalorder %s23, 0
  %p25 = pneg %p24
  %27 = shalt.err (%p25)

</llo_original>
